<compile_context>
chip_gen: v5e
topology: v5e:2x2
jax: 0.10.0
libtpu: 0.0.40
codegen_flags: <defaults>
</compile_context>

<pallas_src>
import jax
import jax.numpy as jnp
from jax.experimental import pallas as pl
from jax.experimental.pallas import tpu as pltpu

LANE = 128  # TPU lane width; all feature dims are padded to this.


def _critic_kernel(idx_ref,   # SMEM (B,)   int32   state indices
                   b3_ref,    # SMEM (1,)   float32 final bias
                   w1_ref,    # VMEM (S, 1, LANE)   gather table (= W1^T rows, padded)
                   b1_ref,    # VMEM (1, LANE)
                   w2_ref,    # VMEM (LANE, LANE)
                   b2_ref,    # VMEM (1, LANE)
                   w3_ref,    # VMEM (1, LANE)      final weight as a row vector
                   out_ref,   # VMEM (B, LANE)      lane-dense output (value bcast on lanes)
                   xw_ref):   # VMEM (B, LANE)      scratch: gathered W1 rows
    B = out_ref.shape[0]

    # Embedding lookup == one_hot(idx) @ W1^T : gather one row of W1 per batch
    # element.  B is small and static, so this unrolls into B dynamic-index
    # row loads (leading, untiled axis of the 3-D table).
    for b in range(B):
        xw_ref[pl.ds(b, 1), :] = w1_ref[idx_ref[b]]          # (1, LANE)

    # Layer 1: bias + relu (matmul already done implicitly by the gather).
    h1 = jnp.maximum(xw_ref[...] + b1_ref[...], 0.0)         # (B, LANE)

    # Layer 2: lane-dense MXU matmul, f32 accumulation.
    h2 = jnp.dot(h1, w2_ref[...], preferred_element_type=jnp.float32)
    h2 = jnp.maximum(h2 + b2_ref[...], 0.0)                  # (B, LANE)

    # Output head: (B, LANE) . (LANE,) -> (B, 1) as mul + lane reduction,
    # then broadcast across lanes so the store is a full-width unmasked vst.
    val = jnp.sum(h2 * w3_ref[...], axis=-1, keepdims=True) + b3_ref[0]  # (B, 1)
    out_ref[...] = jnp.broadcast_to(val, out_ref.shape).astype(out_ref.dtype)


def critic_forward(indices, w1, b1, w2, b2, w3, b3):
    """indices: int array of any shape. Weights stored [in_features, out_features]
    (i.e. transposed vs. PyTorch's Linear.weight). Returns (prod(shape), 1) f32."""
    S, H = w1.shape
    assert H <= LANE, "hidden_dim larger than one lane tile not supported here"

    f32 = jnp.float32
    # Clamp to avoid unchecked OOB VMEM reads (F.one_hot would raise instead).
    idx = jnp.clip(indices.reshape(-1).astype(jnp.int32), 0, S - 1)      # (B,)
    B = idx.shape[0]

    # Lane-dense, zero-padded parameter tiles.
    w1_p = jnp.zeros((S, 1, LANE), f32).at[:, 0, :H].set(w1.astype(f32))
    b1_p = jnp.zeros((1, LANE), f32).at[0, :H].set(b1.astype(f32))
    w2_p = jnp.zeros((LANE, LANE), f32).at[:H, :H].set(w2.astype(f32))
    b2_p = jnp.zeros((1, LANE), f32).at[0, :H].set(b2.astype(f32))
    w3_p = jnp.zeros((1, LANE), f32).at[0, :H].set(w3.reshape(-1).astype(f32))
    b3_r = b3.reshape(1).astype(f32)

    smem = pl.BlockSpec(memory_space=pltpu.MemorySpace.SMEM)
    full = lambda shape: pl.BlockSpec(shape, lambda: (0,) * len(shape))

    out_padded = pl.pallas_call(
        _critic_kernel,
        out_shape=jax.ShapeDtypeStruct((B, LANE), f32),
        grid=(),
        in_specs=[
            smem,                  # idx   -> SMEM
            smem,                  # b3    -> SMEM
            full((S, 1, LANE)),    # w1 gather table
            full((1, LANE)),       # b1
            full((LANE, LANE)),    # w2
            full((1, LANE)),       # b2
            full((1, LANE)),       # w3 row
        ],
        out_specs=full((B, LANE)),
        scratch_shapes=[pltpu.VMEM((B, LANE), f32)],
    )(idx, b3_r, w1_p, b1_p, w2_p, b2_p, w3_p)

    return out_padded[:, :1]                                            # (B, 1)


def _init_linear(key, fan_in, fan_out):
    """Deterministic PyTorch-style Linear init; weight stored as [in, out]."""
    kw, kb = jax.random.split(key)
    bound = 1.0 / jnp.sqrt(float(fan_in))
    w = jax.random.uniform(kw, (fan_in, fan_out), jnp.float32, -bound, bound)
    b = jax.random.uniform(kb, (fan_out,), jnp.float32, -bound, bound)
    return w, b


if __name__ == "__main__":
    # Cliff-walk-like sizes: state_dim = 48 grid cells, hidden = 64, batch = 8.
    state_dim, hidden_dim, batch = 48, 64, 8

    key = jax.random.PRNGKey(0)
    k1, k2, k3, kx = jax.random.split(key, 4)
    w1, b1 = _init_linear(k1, state_dim, hidden_dim)
    w2, b2 = _init_linear(k2, hidden_dim, hidden_dim)
    w3, b3 = _init_linear(k3, hidden_dim, 1)

    # Observation indices (what the PyTorch module receives as `input`).
    indices = jax.random.randint(kx, (batch,), 0, state_dim, dtype=jnp.int32)

    out = critic_forward(indices, w1, b1, w2, b2, w3, b3)
    jax.block_until_ready(out)

    # Pure-JAX reference check (one-hot formulation, same weight layout).
    x = jax.nn.one_hot(indices, state_dim, dtype=jnp.float32)
    h1 = jax.nn.relu(x @ w1 + b1)
    h2 = jax.nn.relu(h1 @ w2 + b2)
    ref = h2 @ w3 + b3
    assert out.shape == (batch, 1)
    assert jnp.allclose(out, ref, atol=1e-5, rtol=1e-5), "mismatch vs reference"

    print("KERNEL_OK")
</pallas_src>

<mosaic_0001>
module attributes {stable_mosaic.version = 11 : i64} {
  func.func @_critic_kernel(%arg0: memref<8xi32, #tpu.memory_space<smem>>, %arg1: memref<1xf32, #tpu.memory_space<smem>>, %arg2: memref<48x1x128xf32, #tpu.memory_space<vmem>>, %arg3: memref<1x128xf32, #tpu.memory_space<vmem>>, %arg4: memref<128x128xf32, #tpu.memory_space<vmem>>, %arg5: memref<1x128xf32, #tpu.memory_space<vmem>>, %arg6: memref<1x128xf32, #tpu.memory_space<vmem>>, %arg7: memref<8x128xf32, #tpu.memory_space<vmem>>, %arg8: memref<8x128xf32, #tpu.memory_space<vmem>>) attributes {dimension_semantics = [], scalar_prefetch = 0 : i64, scratch_operands = 1 : i64, tpu.core_type = #tpu.core_type<tc>} {
    %c0 = arith.constant 0 : index
    %0 = memref.load %arg0[%c0] : memref<8xi32, #tpu.memory_space<smem>>
    %1 = arith.index_cast %0 : i32 to index
    %c0_0 = arith.constant 0 : index
    %c0_1 = arith.constant 0 : index
    %2 = vector.load %arg2[%1, %c0_0, %c0_1] : memref<48x1x128xf32, #tpu.memory_space<vmem>>, vector<1x1x128xf32>
    %3 = vector.shape_cast %2 : vector<1x1x128xf32> to vector<1x128xf32>
    %c0_2 = arith.constant 0 : index
    %c0_3 = arith.constant 0 : index
    %4 = vector.load %arg8[%c0_2, %c0_3] : memref<8x128xf32, #tpu.memory_space<vmem>>, vector<1x128xf32>
    tpu.vector_store %arg8[%c0_2, %c0_3], %3 {strides = array<i32>} : memref<8x128xf32, #tpu.memory_space<vmem>>, vector<1x128xf32>,
    %c1 = arith.constant 1 : index
    %5 = memref.load %arg0[%c1] : memref<8xi32, #tpu.memory_space<smem>>
    %6 = arith.index_cast %5 : i32 to index
    %c0_4 = arith.constant 0 : index
    %c0_5 = arith.constant 0 : index
    %7 = vector.load %arg2[%6, %c0_4, %c0_5] : memref<48x1x128xf32, #tpu.memory_space<vmem>>, vector<1x1x128xf32>
    %8 = vector.shape_cast %7 : vector<1x1x128xf32> to vector<1x128xf32>
    %c1_6 = arith.constant 1 : index
    %c0_7 = arith.constant 0 : index
    %9 = vector.load %arg8[%c1_6, %c0_7] : memref<8x128xf32, #tpu.memory_space<vmem>>, vector<1x128xf32>
    tpu.vector_store %arg8[%c1_6, %c0_7], %8 {strides = array<i32>} : memref<8x128xf32, #tpu.memory_space<vmem>>, vector<1x128xf32>,
    %c2 = arith.constant 2 : index
    %10 = memref.load %arg0[%c2] : memref<8xi32, #tpu.memory_space<smem>>
    %11 = arith.index_cast %10 : i32 to index
    %c0_8 = arith.constant 0 : index
    %c0_9 = arith.constant 0 : index
    %12 = vector.load %arg2[%11, %c0_8, %c0_9] : memref<48x1x128xf32, #tpu.memory_space<vmem>>, vector<1x1x128xf32>
    %13 = vector.shape_cast %12 : vector<1x1x128xf32> to vector<1x128xf32>
    %c2_10 = arith.constant 2 : index
    %c0_11 = arith.constant 0 : index
    %14 = vector.load %arg8[%c2_10, %c0_11] : memref<8x128xf32, #tpu.memory_space<vmem>>, vector<1x128xf32>
    tpu.vector_store %arg8[%c2_10, %c0_11], %13 {strides = array<i32>} : memref<8x128xf32, #tpu.memory_space<vmem>>, vector<1x128xf32>,
    %c3 = arith.constant 3 : index
    %15 = memref.load %arg0[%c3] : memref<8xi32, #tpu.memory_space<smem>>
    %16 = arith.index_cast %15 : i32 to index
    %c0_12 = arith.constant 0 : index
    %c0_13 = arith.constant 0 : index
    %17 = vector.load %arg2[%16, %c0_12, %c0_13] : memref<48x1x128xf32, #tpu.memory_space<vmem>>, vector<1x1x128xf32>
    %18 = vector.shape_cast %17 : vector<1x1x128xf32> to vector<1x128xf32>
    %c3_14 = arith.constant 3 : index
    %c0_15 = arith.constant 0 : index
    %19 = vector.load %arg8[%c3_14, %c0_15] : memref<8x128xf32, #tpu.memory_space<vmem>>, vector<1x128xf32>
    tpu.vector_store %arg8[%c3_14, %c0_15], %18 {strides = array<i32>} : memref<8x128xf32, #tpu.memory_space<vmem>>, vector<1x128xf32>,
    %c4 = arith.constant 4 : index
    %20 = memref.load %arg0[%c4] : memref<8xi32, #tpu.memory_space<smem>>
    %21 = arith.index_cast %20 : i32 to index
    %c0_16 = arith.constant 0 : index
    %c0_17 = arith.constant 0 : index
    %22 = vector.load %arg2[%21, %c0_16, %c0_17] : memref<48x1x128xf32, #tpu.memory_space<vmem>>, vector<1x1x128xf32>
    %23 = vector.shape_cast %22 : vector<1x1x128xf32> to vector<1x128xf32>
    %c4_18 = arith.constant 4 : index
    %c0_19 = arith.constant 0 : index
    %24 = vector.load %arg8[%c4_18, %c0_19] : memref<8x128xf32, #tpu.memory_space<vmem>>, vector<1x128xf32>
    tpu.vector_store %arg8[%c4_18, %c0_19], %23 {strides = array<i32>} : memref<8x128xf32, #tpu.memory_space<vmem>>, vector<1x128xf32>,
    %c5 = arith.constant 5 : index
    %25 = memref.load %arg0[%c5] : memref<8xi32, #tpu.memory_space<smem>>
    %26 = arith.index_cast %25 : i32 to index
    %c0_20 = arith.constant 0 : index
    %c0_21 = arith.constant 0 : index
    %27 = vector.load %arg2[%26, %c0_20, %c0_21] : memref<48x1x128xf32, #tpu.memory_space<vmem>>, vector<1x1x128xf32>
    %28 = vector.shape_cast %27 : vector<1x1x128xf32> to vector<1x128xf32>
    %c5_22 = arith.constant 5 : index
    %c0_23 = arith.constant 0 : index
    %29 = vector.load %arg8[%c5_22, %c0_23] : memref<8x128xf32, #tpu.memory_space<vmem>>, vector<1x128xf32>
    tpu.vector_store %arg8[%c5_22, %c0_23], %28 {strides = array<i32>} : memref<8x128xf32, #tpu.memory_space<vmem>>, vector<1x128xf32>,
    %c6 = arith.constant 6 : index
    %30 = memref.load %arg0[%c6] : memref<8xi32, #tpu.memory_space<smem>>
    %31 = arith.index_cast %30 : i32 to index
    %c0_24 = arith.constant 0 : index
    %c0_25 = arith.constant 0 : index
    %32 = vector.load %arg2[%31, %c0_24, %c0_25] : memref<48x1x128xf32, #tpu.memory_space<vmem>>, vector<1x1x128xf32>
    %33 = vector.shape_cast %32 : vector<1x1x128xf32> to vector<1x128xf32>
    %c6_26 = arith.constant 6 : index
    %c0_27 = arith.constant 0 : index
    %34 = vector.load %arg8[%c6_26, %c0_27] : memref<8x128xf32, #tpu.memory_space<vmem>>, vector<1x128xf32>
    tpu.vector_store %arg8[%c6_26, %c0_27], %33 {strides = array<i32>} : memref<8x128xf32, #tpu.memory_space<vmem>>, vector<1x128xf32>,
    %c7 = arith.constant 7 : index
    %35 = memref.load %arg0[%c7] : memref<8xi32, #tpu.memory_space<smem>>
    %36 = arith.index_cast %35 : i32 to index
    %c0_28 = arith.constant 0 : index
    %c0_29 = arith.constant 0 : index
    %37 = vector.load %arg2[%36, %c0_28, %c0_29] : memref<48x1x128xf32, #tpu.memory_space<vmem>>, vector<1x1x128xf32>
    %38 = vector.shape_cast %37 : vector<1x1x128xf32> to vector<1x128xf32>
    %c7_30 = arith.constant 7 : index
    %c0_31 = arith.constant 0 : index
    %39 = vector.load %arg8[%c7_30, %c0_31] : memref<8x128xf32, #tpu.memory_space<vmem>>, vector<1x128xf32>
    tpu.vector_store %arg8[%c7_30, %c0_31], %38 {strides = array<i32>} : memref<8x128xf32, #tpu.memory_space<vmem>>, vector<1x128xf32>,
    %c0_32 = arith.constant 0 : index
    %c0_33 = arith.constant 0 : index
    %40 = vector.load %arg8[%c0_32, %c0_33] : memref<8x128xf32, #tpu.memory_space<vmem>>, vector<8x128xf32>
    %c0_34 = arith.constant 0 : index
    %c0_35 = arith.constant 0 : index
    %41 = vector.load %arg3[%c0_34, %c0_35] : memref<1x128xf32, #tpu.memory_space<vmem>>, vector<1x128xf32>
    %42 = vector.broadcast %41 : vector<1x128xf32> to vector<8x128xf32>
    %43 = arith.addf %40, %42 : vector<8x128xf32>
    %cst = arith.constant 0.000000e+00 : f32
    %44 = vector.broadcast %cst : f32 to vector<8x128xf32>
    %45 = arith.maximumf %43, %44 : vector<8x128xf32>
    %c0_36 = arith.constant 0 : index
    %c0_37 = arith.constant 0 : index
    %46 = vector.load %arg4[%c0_36, %c0_37] : memref<128x128xf32, #tpu.memory_space<vmem>>, vector<128x128xf32>
    %cst_38 = arith.constant dense<0.000000e+00> : vector<8x128xf32>
    %47 = tpu.matmul %45, %46, %cst_38 {dimension_numbers = #tpu.dot_dimension_numbers<[1], [0], [0], [1], [0, 0, 1, 1], [], []>} : vector<8x128xf32>, vector<128x128xf32>, vector<8x128xf32> -> vector<8x128xf32>
    %c0_39 = arith.constant 0 : index
    %c0_40 = arith.constant 0 : index
    %48 = vector.load %arg5[%c0_39, %c0_40] : memref<1x128xf32, #tpu.memory_space<vmem>>, vector<1x128xf32>
    %49 = vector.broadcast %48 : vector<1x128xf32> to vector<8x128xf32>
    %50 = arith.addf %47, %49 : vector<8x128xf32>
    %cst_41 = arith.constant 0.000000e+00 : f32
    %51 = vector.broadcast %cst_41 : f32 to vector<8x128xf32>
    %52 = arith.maximumf %50, %51 : vector<8x128xf32>
    %c0_42 = arith.constant 0 : index
    %c0_43 = arith.constant 0 : index
    %53 = vector.load %arg6[%c0_42, %c0_43] : memref<1x128xf32, #tpu.memory_space<vmem>>, vector<1x128xf32>
    %54 = vector.broadcast %53 : vector<1x128xf32> to vector<8x128xf32>
    %55 = arith.mulf %52, %54 : vector<8x128xf32>
    %cst_44 = arith.constant dense<0.000000e+00> : vector<8xf32>
    %56 = vector.multi_reduction <add>, %55, %cst_44 [1] : vector<8x128xf32> to vector<8xf32>
    %57 = vector.shape_cast %56 : vector<8xf32> to vector<8x1xf32>
    %c0_45 = arith.constant 0 : index
    %58 = memref.load %arg1[%c0_45] : memref<1xf32, #tpu.memory_space<smem>>
    %59 = vector.broadcast %58 : f32 to vector<8x1xf32>
    %60 = arith.addf %57, %59 : vector<8x1xf32>
    %61 = vector.shape_cast %60 : vector<8x1xf32> to vector<8x1xf32>
    %62 = vector.broadcast %61 : vector<8x1xf32> to vector<8x128xf32>
    %c0_46 = arith.constant 0 : index
    %c0_47 = arith.constant 0 : index
    %63 = vector.load %arg7[%c0_46, %c0_47] : memref<8x128xf32, #tpu.memory_space<vmem>>, vector<8x128xf32>
    tpu.vector_store %arg7[%c0_46, %c0_47], %62 {strides = array<i32>} : memref<8x128xf32, #tpu.memory_space<vmem>>, vector<8x128xf32>,
    return
  }
}

</mosaic_0001>

<llo_original>
// kernel: tpu_custom_call.1
$region0: #{tpu_custom_call.1}
  #allocation0 [shape = 'u32[]', space=smem, size = 0x4, offset = 0x4, fixed_abs, tag = 'smem constant byte address 0x4 - core index']
  #allocation1 [shape = 'u32[72,128]{1,0:T(1,128)}', space=vmem, size = 0x9000, scoped, tag = 'internal scratch']
  #allocation2 [shape = 'f32[8,128]{1,0:T(8,128)}', space=vmem, size = 0x1000, scoped, tag = 'scratch operand']
  #allocation3 [shape = 'f32[1]{0:T(128)S(6)}', space=smem, size = 0x200, scoped, tag = 'scoped memory for tpu_custom_call.1']
  %s0 = inlined_call_operand.vmem [shape: s32[8], index: 0, kind: input, shape index: {}]
  %s1 = inlined_call_operand.<no memory space> [shape: f32[1], index: 1, kind: input, shape index: {}]
  %s2 = inlined_call_operand.hbm [shape: f32[48,1,128], index: 2, kind: input, shape index: {}]
  %s3 = inlined_call_operand.vmem [shape: f32[1,128], index: 3, kind: input, shape index: {}]
  %s4 = inlined_call_operand.hbm [shape: f32[128,128], index: 4, kind: input, shape index: {}]
  %s5 = inlined_call_operand.vmem [shape: f32[1,128], index: 5, kind: input, shape index: {}]
  %s6 = inlined_call_operand.vmem [shape: f32[1,128], index: 6, kind: input, shape index: {}]
  %s7 = inlined_call_operand.hbm [shape: f32[8,128], index: 7, kind: output, shape index: {}]
  %s8 = sld [smem:[#allocation0]]
  $region50: #{tpu_custom_call.1} parent=0
    _
  %s10 = ssub.s32 1, %s8
  %s11 = scalar_select 0, %s10, %s8
  %12 = sst [smem:[#allocation3]] %s1
  $region1: #{tpu_custom_call.1} parent=0
    #allocation4 [shape = 'u8[512]{0}', space=smem, size = 0x200, scoped, tag = 'input window, operand 0, single buffered']
    #allocation5 [shape = 's32[1]{0}', space=sflag, size = 0x4, scoped, tag = 'scoped memory for tpu_custom_call.1']
    #allocation6 [shape = 's32[1]{0}', space=sflag, size = 0x4, scoped, tag = 'scoped memory for tpu_custom_call.1']
    #allocation7 [shape = 's32[1]{0}', space=sflag, size = 0x4, scoped, tag = 'scoped memory for tpu_custom_call.1']
    #allocation8 [shape = 'u8[24576]{0}', space=vmem, size = 0x6000, scoped, tag = 'input window, operand 2, single buffered']
    #allocation9 [shape = 'u8[65536]{0}', space=vmem, size = 0x10000, scoped, tag = 'input window, operand 4, single buffered']
    #allocation10 [shape = 's32[1]{0}', space=sflag, size = 0x4, scoped, tag = 'scoped memory for tpu_custom_call.1']
    #allocation11 [shape = 'u8[4096]{0}', space=vmem, size = 0x1000, scoped, tag = 'output window, operand 0, single buffered']
    %13 = vsyncpa [#allocation7], 0
    %14 = vsyncpa [#allocation5], 0
    %15 = vsyncpa [#allocation10], 0
    %16 = vsyncpa [#allocation6], 0
    // Predicated region
    $region2: #{tpu_custom_call.1} parent=1 // pred_check
      _
    $region3: #{tpu_custom_call.1} parent=1 // pred_check_branch
      %18 = sbr.rel (0) target = $region5
    $region4: #{tpu_custom_call.1} parent=1 // pred_region
      %20 = vsyncadd [#allocation7], 0
      %s22 = sshll.u32 %s0, 4
      %s23 = int_to_ptr.vmem [resolvable:$true] %s22
      %25 = dma.vmem_to_smem %s23, 16, [#allocation4], [#allocation7]
    $region5: #{tpu_custom_call.1} parent=1 // pred_fallthru
      _
    // Predicated region
    $region6: #{tpu_custom_call.1} parent=1 // pred_check
      _
    $region7: #{tpu_custom_call.1} parent=1 // pred_check_branch
      %27 = sbr.rel (0) target = $region9
    $region8: #{tpu_custom_call.1} parent=1 // pred_region
      _
    $region9: #{tpu_custom_call.1} parent=1 // pred_fallthru
      _
    // Predicated region
    $region10: #{tpu_custom_call.1} parent=1 // pred_check
      _
    $region11: #{tpu_custom_call.1} parent=1 // pred_check_branch
      %29 = sbr.rel (0) target = $region13
    $region12: #{tpu_custom_call.1} parent=1 // pred_region
      %31 = vsyncadd [#allocation5], 0
      %s32 = sshll.u32 %s2, 4
      %s33 = int_to_ptr.hbm [resolvable:$true] %s32
      %s34 = sshll.u32 [#allocation8], 4
      %s35 = int_to_ptr.vmem [resolvable:$true] %s34
      %40 = dma.hbm_to_vmem [thread:$0]  %s33, 768, %s35, [#allocation5], 16, 16, 1
    $region13: #{tpu_custom_call.1} parent=1 // pred_fallthru
      _
    // Predicated region
    $region14: #{tpu_custom_call.1} parent=1 // pred_check
      _
    $region15: #{tpu_custom_call.1} parent=1 // pred_check_branch
      %42 = sbr.rel (0) target = $region17
    $region16: #{tpu_custom_call.1} parent=1 // pred_region
      _
    $region17: #{tpu_custom_call.1} parent=1 // pred_fallthru
      _
    // Predicated region
    $region18: #{tpu_custom_call.1} parent=1 // pred_check
      _
    $region19: #{tpu_custom_call.1} parent=1 // pred_check_branch
      %44 = sbr.rel (0) target = $region21
    $region20: #{tpu_custom_call.1} parent=1 // pred_region
      %46 = vsyncadd [#allocation10], 0
      %s47 = sshll.u32 %s4, 4
      %s48 = int_to_ptr.hbm [resolvable:$true] %s47
      %s49 = sshll.u32 [#allocation9], 4
      %s50 = int_to_ptr.vmem [resolvable:$true] %s49
      %55 = dma.hbm_to_vmem [thread:$0]  %s48, 2048, %s50, [#allocation10], 128, 128, 8
    $region21: #{tpu_custom_call.1} parent=1 // pred_fallthru
      _
    // Predicated region
    $region22: #{tpu_custom_call.1} parent=1 // pred_check
      _
    $region23: #{tpu_custom_call.1} parent=1 // pred_check_branch
      %57 = sbr.rel (0) target = $region25
    $region24: #{tpu_custom_call.1} parent=1 // pred_region
      _
    $region25: #{tpu_custom_call.1} parent=1 // pred_fallthru
      _
    // Predicated region
    $region26: #{tpu_custom_call.1} parent=1 // pred_check
      _
    $region27: #{tpu_custom_call.1} parent=1 // pred_check_branch
      %59 = sbr.rel (0) target = $region29
    $region28: #{tpu_custom_call.1} parent=1 // pred_region
      _
    $region29: #{tpu_custom_call.1} parent=1 // pred_fallthru
      _
    // Predicated region
    $region30: #{tpu_custom_call.1} parent=1 // pred_check
      _
    $region31: #{tpu_custom_call.1} parent=1 // pred_check_branch
      %61 = sbr.rel (0) target = $region33
    $region32: #{tpu_custom_call.1} parent=1 // pred_region
      %63 = dma.done [#allocation7], 16
    $region33: #{tpu_custom_call.1} parent=1 // pred_fallthru
      _
    // Predicated region
    $region34: #{tpu_custom_call.1} parent=1 // pred_check
      _
    $region35: #{tpu_custom_call.1} parent=1 // pred_check_branch
      %65 = sbr.rel (0) target = $region37
    $region36: #{tpu_custom_call.1} parent=1 // pred_region
      %67 = dma.done [#allocation5], 768
    $region37: #{tpu_custom_call.1} parent=1 // pred_fallthru
      _
    // Predicated region
    $region38: #{tpu_custom_call.1} parent=1 // pred_check
      _
    $region39: #{tpu_custom_call.1} parent=1 // pred_check_branch
      %69 = sbr.rel (0) target = $region41
    $region40: #{tpu_custom_call.1} parent=1 // pred_region
      %71 = dma.done [#allocation10], 2048
    $region41: #{tpu_custom_call.1} parent=1 // pred_fallthru
      _
    %72 = sfence
    %s73 = sld [smem:[#allocation4]]
    %s74 = scalar_lea.vmem [#allocation8], %s73
    %v75 = vld [vmem:[%s74] sm:$0x1]
    %76 = vst [vmem:[#allocation2] sm:$0x1] %v75
    %s77 = sld [smem:[#allocation4 + $0x1]]
    %s78 = scalar_lea.vmem [#allocation8], %s77
    %v79 = vld [vmem:[%s78] sm:$0x1]
    %80 = vst [vmem:[#allocation2 + $0x1] sm:$0x1] %v79
    %s81 = sld [smem:[#allocation4 + $0x2]]
    %s82 = scalar_lea.vmem [#allocation8], %s81
    %v83 = vld [vmem:[%s82] sm:$0x1]
    %84 = vst [vmem:[#allocation2 + $0x2] sm:$0x1] %v83
    %s85 = sld [smem:[#allocation4 + $0x3]]
    %s86 = scalar_lea.vmem [#allocation8], %s85
    %v87 = vld [vmem:[%s86] sm:$0x1]
    %88 = vst [vmem:[#allocation2 + $0x3] sm:$0x1] %v87
    %s89 = sld [smem:[#allocation4 + $0x4]]
    %s90 = scalar_lea.vmem [#allocation8], %s89
    %v91 = vld [vmem:[%s90] sm:$0x1]
    %92 = vst [vmem:[#allocation2 + $0x4] sm:$0x1] %v91
    %s93 = sld [smem:[#allocation4 + $0x5]]
    %s94 = scalar_lea.vmem [#allocation8], %s93
    %v95 = vld [vmem:[%s94] sm:$0x1]
    %96 = vst [vmem:[#allocation2 + $0x5] sm:$0x1] %v95
    %s97 = sld [smem:[#allocation4 + $0x6]]
    %s98 = scalar_lea.vmem [#allocation8], %s97
    %v99 = vld [vmem:[%s98] sm:$0x1]
    %100 = vst [vmem:[#allocation2 + $0x6] sm:$0x1] %v99
    %s101 = sld [smem:[#allocation4 + $0x7]]
    %s102 = scalar_lea.vmem [#allocation8], %s101
    %v103 = vld [vmem:[%s102] sm:$0x1]
    %104 = vst [vmem:[#allocation2 + $0x7] sm:$0x1] %v103
    %v105 = vld [vmem:[#allocation2] sm:$0xff]
    %v106 = vld [vmem:[%s3] sm:$0x1]
    %v108 = vperm.slane %v106, 0
    %v110 = vadd.f32 %v105, %v108
    %v111 = vmax.f32 %v110, 0.0
    %v112 = vld [vmem:[#allocation9] sm:$0xff]
    %v113 = vld [vmem:[#allocation9 + $0x8] sm:$0xff]
    %v114 = vld [vmem:[#allocation9 + $0x10] sm:$0xff]
    %v115 = vld [vmem:[#allocation9 + $0x18] sm:$0xff]
    %v116 = vld [vmem:[#allocation9 + $0x20] sm:$0xff]
    %v117 = vld [vmem:[#allocation9 + $0x28] sm:$0xff]
    %v118 = vld [vmem:[#allocation9 + $0x30] sm:$0xff]
    %v119 = vld [vmem:[#allocation9 + $0x38] sm:$0xff]
    %v120 = vld [vmem:[#allocation9 + $0x40] sm:$0xff]
    %v121 = vld [vmem:[#allocation9 + $0x48] sm:$0xff]
    %v122 = vld [vmem:[#allocation9 + $0x50] sm:$0xff]
    %v123 = vld [vmem:[#allocation9 + $0x58] sm:$0xff]
    %v124 = vld [vmem:[#allocation9 + $0x60] sm:$0xff]
    %v125 = vld [vmem:[#allocation9 + $0x68] sm:$0xff]
    %v126 = vld [vmem:[#allocation9 + $0x70] sm:$0xff]
    %v127 = vld [vmem:[#allocation9 + $0x78] sm:$0xff]
    %v128 = vld [vmem:[%s5] sm:$0x1]
    %v130 = vperm.slane %v128, 0
    %132 = vmatpush.msra.mxu0 %v127
    %133 = vmatpush.msra.mxu0 %v126
    %134 = vmatpush.msra.mxu0 %v125
    %135 = vmatpush.msra.mxu0 %v124
    %136 = vmatpush.msra.mxu0 %v123
    %137 = vmatpush.msra.mxu0 %v122
    %138 = vmatpush.msra.mxu0 %v121
    %139 = vmatpush.msra.mxu0 %v120
    %140 = vmatpush.msra.mxu0 %v119
    %141 = vmatpush.msra.mxu0 %v118
    %142 = vmatpush.msra.mxu0 %v117
    %143 = vmatpush.msra.mxu0 %v116
    %144 = vmatpush.msra.mxu0 %v115
    %145 = vmatpush.msra.mxu0 %v114
    %146 = vmatpush.msra.mxu0 %v113
    %147 = vmatpush.msra.mxu0 %v112
    %148 = vmatmul.f32.gmra.mxu0 %v111
    %v149 = vpop.f32.mrf.mxu0
    %v150 = vadd.f32 %v130, %v149
    %151 = vdwg.mxu0
    %v152 = vmax.f32 %v150, 0.0
    %v153 = vld [vmem:[%s6] sm:$0x1]
    %v155 = vperm.slane %v153, 0
    %v157 = vmul.f32 %v152, %v155
    %158 = vadd.xlane.f32.xlu0 %v157
    %v159 = vpop.xlane.xlu0 %158
    %s160 = sld [smem:[#allocation3]]
    %v161 = vstv %s160
    %v162 = vadd.f32 %v159, %v161
    %163 = vst [vmem:[#allocation11] sm:$0xff] %v162
    // Predicated region
    $region42: #{tpu_custom_call.1} parent=1 // pred_check
      _
    $region43: #{tpu_custom_call.1} parent=1 // pred_check_branch
      %165 = sbr.rel (0) target = $region45
    $region44: #{tpu_custom_call.1} parent=1 // pred_region
      %167 = vsyncadd [#allocation6], 0
      %s169 = sshll.u32 [#allocation11], 4
      %s170 = int_to_ptr.vmem [resolvable:$true] %s169
      %s171 = sshll.u32 %s7, 4
      %s172 = int_to_ptr.hbm [resolvable:$true] %s171
      %174 = dma.vmem_to_hbm [thread:$0]  %s170, 128, %s172, [#allocation6]
    $region45: #{tpu_custom_call.1} parent=1 // pred_fallthru
      _
    // Predicated region
    $region46: #{tpu_custom_call.1} parent=1 // pred_check
      _
    $region47: #{tpu_custom_call.1} parent=1 // pred_check_branch
      %176 = sbr.rel (0) target = $region49
    $region48: #{tpu_custom_call.1} parent=1 // pred_region
      %178 = dma.done [#allocation6], 128
    $region49: #{tpu_custom_call.1} parent=1 // pred_fallthru
      _
    %179 = vsyncpa [#allocation5], 1
    %180 = vsyncpa [#allocation10], 1
    %181 = vsyncpa [#allocation6], 1
    %182 = vsyncpa [#allocation7], 1

</llo_original>
